<compile_context>
chip_gen: v5e
topology: v5e:2x2
jax: 0.10.0
libtpu: 0.0.40
codegen_flags: <defaults>
</compile_context>

<pallas_src>
import jax
import jax.numpy as jnp
from jax.experimental import pallas as pl
from jax.experimental.pallas import tpu as pltpu


# ----------------------------------------------------------------------------
# Pallas kernel: fused 1x1-conv (single matmul) + BN shift + ReLU
# ----------------------------------------------------------------------------
def _spectral_conv_bn_relu_kernel(x_ref, w_ref, shift_ref, o_ref):
    # x_ref     : (Bb, 2*Cin, Thw)   bf16   concat(real, imag) spectral slab
    # w_ref     : (2*Cout, 2*Cin)    bf16   conv weight, BN scale folded in
    # shift_ref : (2*Cout, 1)        f32    folded BN shift
    # o_ref     : (Bb, 2*Cout, Thw)  bf16 (or f32 via out_dtype flag)
    w = w_ref[...]
    shift = shift_ref[...]
    for i in range(x_ref.shape[0]):          # Bb is small and static
        acc = jnp.dot(w, x_ref[i], preferred_element_type=jnp.float32)
        acc = acc + shift                     # broadcast over lane (spatial) axis
        o_ref[i] = jnp.maximum(acc, 0.0).astype(o_ref.dtype)


# ----------------------------------------------------------------------------
# Tiling / VMEM sizing (generation-aware, sublane-padding-aware)
# ----------------------------------------------------------------------------
def _round_up(x, m):
    return ((x + m - 1) // m) * m


def _vmem_capacity_bytes():
    try:
        info = pltpu.get_tpu_info()
        cap = getattr(info, "vmem_capacity_bytes", None)
        if cap:
            return int(cap)
    except Exception:
        pass
    return 64 * 1024 * 1024          # conservative fallback (v7x per-TC VMEM)


def _footprint_bytes(bb, c2_in, c2_out, thw, out_itemsize):
    """Padded, double-buffered VMEM footprint of one pipeline stage."""
    thw_p = _round_up(max(thw, 1), 128)
    x_blk = bb * _round_up(c2_in, 16) * thw_p * 2                    # bf16
    o_blk = bb * _round_up(c2_out, 16 if out_itemsize == 2 else 8) \
        * thw_p * out_itemsize
    w_blk = _round_up(c2_out, 16) * _round_up(c2_in, 128) * 2        # bf16
    s_blk = _round_up(c2_out, 8) * 128 * 4                           # f32
    acc = bb * _round_up(c2_out, 8) * thw_p * 4                      # f32 temp
    return 2 * (x_blk + o_blk + w_blk + s_blk) + acc


def _pick_tiles(B, c2_in, c2_out, hwf, vmem_cap, out_itemsize):
    budget = int(0.35 * vmem_cap)
    lane_cap = 4096 if vmem_cap >= 96 * 1024 * 1024 else 2048

    # Batch-block small spatial extents so each grid step moves enough data.
    if hwf < 512:
        target = max(1, 512 // max(hwf, 1))
        bb = 1
        for d in range(1, B + 1):
            if B % d == 0 and d <= target:
                bb = d
    else:
        bb = 1

    # Largest lane tile (full extent, else multiple of 128) within the budget.
    if hwf <= lane_cap and \
            _footprint_bytes(bb, c2_in, c2_out, hwf, out_itemsize) <= budget:
        thw = hwf
    else:
        thw = 128
        t = (min(hwf, lane_cap) // 128) * 128
        while t >= 128:
            if _footprint_bytes(bb, c2_in, c2_out, t, out_itemsize) <= budget:
                thw = t
                break
            t -= 128
    thw = min(thw, hwf) if hwf > 0 else 1

    # If batch blocking blew the budget, shrink it (stay a divisor of B).
    while bb > 1 and \
            _footprint_bytes(bb, c2_in, c2_out, thw, out_itemsize) > budget:
        bb = max(d for d in range(1, bb) if B % d == 0)

    footprint = _footprint_bytes(bb, c2_in, c2_out, thw, out_itemsize)
    vmem_limit = min(max(footprint + (8 << 20), 16 << 20),
                     int(0.5 * vmem_cap))
    return bb, thw, vmem_limit


# ----------------------------------------------------------------------------
# pallas_call wrapper
# ----------------------------------------------------------------------------
def spectral_conv_bn_relu_pallas(x_cat, w, shift, out_dtype=jnp.bfloat16):
    """x_cat: (B, 2*Cin, HWf) bf16; w: (2*Cout, 2*Cin) bf16;
    shift: (2*Cout, 1) f32  ->  (B, 2*Cout, HWf) out_dtype."""
    B, c2_in, hwf = x_cat.shape
    c2_out = w.shape[0]
    out_itemsize = jnp.dtype(out_dtype).itemsize

    bb, thw, vmem_limit = _pick_tiles(B, c2_in, c2_out, hwf,
                                      _vmem_capacity_bytes(), out_itemsize)
    grid = (B // bb, pl.cdiv(hwf, thw))

    flops = 2 * B * c2_out * c2_in * hwf
    bytes_accessed = (B * c2_in * hwf * 2           # activations (bf16)
                      + c2_out * c2_in * 2          # weight (bf16)
                      + c2_out * 4                  # shift (f32)
                      + B * c2_out * hwf * out_itemsize)

    return pl.pallas_call(
        _spectral_conv_bn_relu_kernel,
        out_shape=jax.ShapeDtypeStruct((B, c2_out, hwf), out_dtype),
        grid_spec=pltpu.PrefetchScalarGridSpec(
            num_scalar_prefetch=0,
            grid=grid,
            in_specs=[
                pl.BlockSpec((bb, c2_in, thw), lambda b, j: (b, 0, j)),
                pl.BlockSpec((c2_out, c2_in), lambda b, j: (0, 0)),
                pl.BlockSpec((c2_out, 1), lambda b, j: (0, 0)),
            ],
            out_specs=pl.BlockSpec((bb, c2_out, thw), lambda b, j: (b, 0, j)),
        ),
        compiler_params=pltpu.CompilerParams(
            dimension_semantics=("parallel", "parallel"),
            vmem_limit_bytes=vmem_limit,
            allow_input_fusion=[True, False, False]),
        cost_estimate=pl.CostEstimate(flops=int(flops),
                                      transcendentals=0,
                                      bytes_accessed=int(bytes_accessed)),
    )(x_cat, w, shift)


# ----------------------------------------------------------------------------
# Parameter folding (BatchNorm eval-mode -> scale folded into weight + shift)
# ----------------------------------------------------------------------------
def _fold_bn(conv_w, bn_gamma, bn_beta, bn_mean, bn_var, eps):
    c2_out, c2_in = conv_w.shape[0], conv_w.shape[1]
    w2 = conv_w.reshape(c2_out, c2_in).astype(jnp.float32)
    inv_std = jax.lax.rsqrt(bn_var.astype(jnp.float32) + eps)
    scale = bn_gamma.astype(jnp.float32) * inv_std
    shift = bn_beta.astype(jnp.float32) - bn_mean.astype(jnp.float32) * scale
    w_scaled = w2 * scale[:, None]      # exact fold of BN scale into the conv
    return w_scaled, shift


# ----------------------------------------------------------------------------
# FourierUnit forward
# ----------------------------------------------------------------------------
def fourier_unit_forward(x, conv_w, bn_gamma, bn_beta, bn_mean, bn_var,
                         eps=1e-5):
    """x: (B, C, H, W) float32, NCHW (same as the PyTorch module)."""
    B, C, H, W = x.shape

    # rfft2 over the last two dims, orthonormal — matches torch.fft.rfft2.
    spec = jnp.fft.rfft2(x, norm="ortho")            # (B, C, H, Wf) complex64
    Wf = spec.shape[-1]
    hwf = H * Wf

    # cat([real, imag], dim=1) as in the module; bf16 for the MXU.  With
    # allow_input_fusion this producer chain fuses into the pallas input.
    feat = jnp.concatenate([jnp.real(spec), jnp.imag(spec)], axis=1)
    feat = feat.reshape(B, 2 * C, hwf).astype(jnp.bfloat16)

    w_scaled, shift = _fold_bn(conv_w, bn_gamma, bn_beta, bn_mean, bn_var, eps)
    c2_out = w_scaled.shape[0]

    y = spectral_conv_bn_relu_pallas(feat,
                                     w_scaled.astype(jnp.bfloat16),
                                     shift.reshape(c2_out, 1),
                                     out_dtype=jnp.bfloat16)
    y = y.reshape(B, c2_out, H, Wf)                  # free trailing-dim split

    real, imag = jnp.split(y, 2, axis=1)             # chunk(2, dim=1)
    spec_out = real.astype(jnp.float32) + 1j * imag.astype(jnp.float32)
    out = jnp.fft.irfft2(spec_out, s=(H, W), norm="ortho")
    return out.astype(jnp.float32)


# ----------------------------------------------------------------------------
# Pure-JAX references (sanity check of the Pallas hot path)
# ----------------------------------------------------------------------------
def fourier_unit_reference(x, conv_w, bn_gamma, bn_beta, bn_mean, bn_var,
                           eps=1e-5, simulate_bf16=False):
    B, C, H, W = x.shape
    spec = jnp.fft.rfft2(x, norm="ortho")
    feat = jnp.concatenate([jnp.real(spec), jnp.imag(spec)], axis=1)
    w_scaled, shift = _fold_bn(conv_w, bn_gamma, bn_beta, bn_mean, bn_var, eps)
    if simulate_bf16:
        feat = feat.astype(jnp.bfloat16)
        w_scaled = w_scaled.astype(jnp.bfloat16)
    y = jnp.einsum("bchw,oc->bohw", feat, w_scaled,
                   preferred_element_type=jnp.float32)
    y = jnp.maximum(y + shift[None, :, None, None], 0.0)
    if simulate_bf16:
        y = y.astype(jnp.bfloat16).astype(jnp.float32)   # kernel's bf16 output
    real, imag = jnp.split(y, 2, axis=1)
    return jnp.fft.irfft2(real + 1j * imag, s=(H, W),
                          norm="ortho").astype(jnp.float32)


if __name__ == "__main__":
    key = jax.random.PRNGKey(0)
    k_x, k_w = jax.random.split(key)

    B, C_in, C_out, H, W = 2, 4, 4, 16, 16

    x = jax.random.normal(k_x, (B, C_in, H, W), dtype=jnp.float32)

    # Conv2d(in=2*C_in, out=2*C_out, k=1, bias=False) weight: (8, 8, 1, 1)
    conv_w = jax.random.normal(k_w, (2 * C_out, 2 * C_in, 1, 1),
                               dtype=jnp.float32) * (1.0 / jnp.sqrt(2.0 * C_in))
    # BatchNorm2d(2*C_out), eval-mode running statistics.
    bn_gamma = jnp.ones((2 * C_out,), jnp.float32)
    bn_beta = jnp.zeros((2 * C_out,), jnp.float32)
    bn_mean = jnp.zeros((2 * C_out,), jnp.float32)
    bn_var = jnp.ones((2 * C_out,), jnp.float32)

    fwd = jax.jit(fourier_unit_forward)
    out = jax.block_until_ready(fwd(x, conv_w, bn_gamma, bn_beta,
                                    bn_mean, bn_var))
    assert out.shape == (B, C_out, H, W)
    assert not bool(jnp.any(jnp.isnan(out)))

    # Tight check: reference applies the same bf16 rounding to the matmul
    # inputs and to the kernel output (validates wiring / BN fold exactly).
    ref_bf16 = fourier_unit_reference(x, conv_w, bn_gamma, bn_beta,
                                      bn_mean, bn_var, simulate_bf16=True)
    assert jnp.allclose(out, ref_bf16, atol=1e-2, rtol=1e-2), \
        "mismatch vs bf16 reference"

    # Loose check: full-f32 reference (only bf16 rounding of spectrum/output
    # separates the two paths).
    ref_f32 = fourier_unit_reference(x, conv_w, bn_gamma, bn_beta,
                                     bn_mean, bn_var, simulate_bf16=False)
    assert jnp.allclose(out, ref_f32, atol=5e-2, rtol=5e-2), \
        "mismatch vs f32 reference"

    print("KERNEL_OK")
</pallas_src>

<mosaic_0001>
module attributes {stable_mosaic.version = 11 : i64} {
  func.func @_spectral_conv_bn_relu_kernel(%arg0: i32, %arg1: i32, %arg2: memref<2x8x144xbf16, #tpu.memory_space<vmem>>, %arg3: memref<8x8xbf16, #tpu.memory_space<vmem>>, %arg4: memref<8x1xf32, #tpu.memory_space<vmem>>, %arg5: memref<2x8x144xbf16, #tpu.memory_space<vmem>>) attributes {dimension_semantics = [#tpu.dimension_semantics<parallel>, #tpu.dimension_semantics<parallel>], iteration_bounds = array<i64: 1, 1>, scalar_prefetch = 0 : i64, scratch_operands = 0 : i64, tpu.core_type = #tpu.core_type<tc>, window_params = [{transform_indices = @transform_0, window_bounds = array<i64: 2, 8, 144>}, {pipeline_mode = #tpu.pipeline_mode<synchronous>, transform_indices = @transform_1, window_bounds = array<i64: 8, 8>}, {pipeline_mode = #tpu.pipeline_mode<synchronous>, transform_indices = @transform_2, window_bounds = array<i64: 8, 1>}, {transform_indices = @transform_3, window_bounds = array<i64: 2, 8, 144>}]} {
    %c0 = arith.constant 0 : index
    %c0_0 = arith.constant 0 : index
    %0 = vector.load %arg3[%c0, %c0_0] : memref<8x8xbf16, #tpu.memory_space<vmem>>, vector<8x8xbf16>
    %c0_1 = arith.constant 0 : index
    %c0_2 = arith.constant 0 : index
    %1 = vector.load %arg4[%c0_1, %c0_2] : memref<8x1xf32, #tpu.memory_space<vmem>>, vector<8x1xf32>
    %c0_3 = arith.constant 0 : index
    %c0_4 = arith.constant 0 : index
    %c0_5 = arith.constant 0 : index
    %2 = vector.load %arg2[%c0_3, %c0_4, %c0_5] : memref<2x8x144xbf16, #tpu.memory_space<vmem>>, vector<1x8x144xbf16>
    %3 = vector.shape_cast %2 : vector<1x8x144xbf16> to vector<8x144xbf16>
    %cst = arith.constant dense<0.000000e+00> : vector<8x144xf32>
    %4 = tpu.matmul %0, %3, %cst {dimension_numbers = #tpu.dot_dimension_numbers<[1], [0], [0], [1], [0, 0, 1, 1], [], []>} : vector<8x8xbf16>, vector<8x144xbf16>, vector<8x144xf32> -> vector<8x144xf32>
    %5 = vector.broadcast %1 : vector<8x1xf32> to vector<8x144xf32>
    %6 = arith.addf %4, %5 : vector<8x144xf32>
    %cst_6 = arith.constant 0.000000e+00 : f32
    %7 = vector.broadcast %cst_6 : f32 to vector<8x144xf32>
    %8 = arith.maximumf %6, %7 : vector<8x144xf32>
    %9 = arith.truncf %8 : vector<8x144xf32> to vector<8x144xbf16>
    %c0_7 = arith.constant 0 : index
    %c0_8 = arith.constant 0 : index
    %c0_9 = arith.constant 0 : index
    %10 = vector.load %arg5[%c0_7, %c0_8, %c0_9] : memref<2x8x144xbf16, #tpu.memory_space<vmem>>, vector<1x8x144xbf16>
    %11 = vector.shape_cast %10 : vector<1x8x144xbf16> to vector<8x144xbf16>
    %12 = vector.shape_cast %9 : vector<8x144xbf16> to vector<1x8x144xbf16>
    tpu.vector_store %arg5[%c0_7, %c0_8, %c0_9], %12 {strides = array<i32>} : memref<2x8x144xbf16, #tpu.memory_space<vmem>>, vector<1x8x144xbf16>,
    %c1 = arith.constant 1 : index
    %c0_10 = arith.constant 0 : index
    %c0_11 = arith.constant 0 : index
    %13 = vector.load %arg2[%c1, %c0_10, %c0_11] : memref<2x8x144xbf16, #tpu.memory_space<vmem>>, vector<1x8x144xbf16>
    %14 = vector.shape_cast %13 : vector<1x8x144xbf16> to vector<8x144xbf16>
    %cst_12 = arith.constant dense<0.000000e+00> : vector<8x144xf32>
    %15 = tpu.matmul %0, %14, %cst_12 {dimension_numbers = #tpu.dot_dimension_numbers<[1], [0], [0], [1], [0, 0, 1, 1], [], []>} : vector<8x8xbf16>, vector<8x144xbf16>, vector<8x144xf32> -> vector<8x144xf32>
    %16 = vector.broadcast %1 : vector<8x1xf32> to vector<8x144xf32>
    %17 = arith.addf %15, %16 : vector<8x144xf32>
    %cst_13 = arith.constant 0.000000e+00 : f32
    %18 = vector.broadcast %cst_13 : f32 to vector<8x144xf32>
    %19 = arith.maximumf %17, %18 : vector<8x144xf32>
    %20 = arith.truncf %19 : vector<8x144xf32> to vector<8x144xbf16>
    %c1_14 = arith.constant 1 : index
    %c0_15 = arith.constant 0 : index
    %c0_16 = arith.constant 0 : index
    %21 = vector.load %arg5[%c1_14, %c0_15, %c0_16] : memref<2x8x144xbf16, #tpu.memory_space<vmem>>, vector<1x8x144xbf16>
    %22 = vector.shape_cast %21 : vector<1x8x144xbf16> to vector<8x144xbf16>
    %23 = vector.shape_cast %20 : vector<8x144xbf16> to vector<1x8x144xbf16>
    tpu.vector_store %arg5[%c1_14, %c0_15, %c0_16], %23 {strides = array<i32>} : memref<2x8x144xbf16, #tpu.memory_space<vmem>>, vector<1x8x144xbf16>,
    return
  }
  func.func @transform_0(%arg0: i32, %arg1: i32) -> (i32, i32, i32) {
    %c0_i32 = arith.constant 0 : i32
    %c0_i32_0 = arith.constant 0 : i32
    return %arg0, %c0_i32, %arg1 : i32, i32, i32
  }
  func.func @transform_1(%arg0: i32, %arg1: i32) -> (i32, i32) {
    %c0_i32 = arith.constant 0 : i32
    %c0_i32_0 = arith.constant 0 : i32
    %c0_i32_1 = arith.constant 0 : i32
    return %c0_i32, %c0_i32_0 : i32, i32
  }
  func.func @transform_2(%arg0: i32, %arg1: i32) -> (i32, i32) {
    %c0_i32 = arith.constant 0 : i32
    %c0_i32_0 = arith.constant 0 : i32
    %c0_i32_1 = arith.constant 0 : i32
    return %c0_i32, %c0_i32_0 : i32, i32
  }
  func.func @transform_3(%arg0: i32, %arg1: i32) -> (i32, i32, i32) {
    %c0_i32 = arith.constant 0 : i32
    %c0_i32_0 = arith.constant 0 : i32
    return %arg0, %c0_i32, %arg1 : i32, i32, i32
  }
}

</mosaic_0001>

<llo_original>
// kernel: reverse.0
$region0: #{reverse.0}
  %s0 = inlined_call_operand.vmem [shape: f32[2,4,16,7], index: 0, kind: input, shape index: {}]
  %s1 = inlined_call_operand.vmem [shape: f32[2,4,16,7], index: 1, kind: output, shape index: {}]
  $region1: #{reverse.0} parent=0
    #allocation0 [shape = 'u8[65536]{0}', space=vmem, size = 0x10000, scoped, tag = 'operand span for operand 0']
    #allocation1 [shape = 'u8[32768]{0}', space=vmem, size = 0x8000, scoped, tag = 'operand span for operand 1']
    %s2 = scalar_lea.vmem [#allocation0], 8
    // Predicated region
    $region2: #{reverse.0} parent=1 // pred_check
      _
    $region3: #{reverse.0} parent=1 // pred_check_branch
      %4 = sbr.rel (0) target = $region5
    $region4: #{reverse.0} parent=1 // pred_region
      // Predicated region
      $region6: #{reverse.0} parent=4 // pred_check
        _
      $region7: #{reverse.0} parent=4 // pred_check_branch
        %6 = sbr.rel (0) target = $region9
      $region8: #{reverse.0} parent=4 // pred_region
        // Predicated region
        $region21: #{reverse.0} parent=8 // pred_check
          _
        $region22: #{reverse.0} parent=8 // pred_check_branch
          %36 = sbr.rel (0) target = $region24
        $region23: #{reverse.0} parent=8 // pred_region
          loop: start=0, step=1, limit=1
          $region25: #{reverse.0} parent=23 // loop_pre_header
            _
          $region26: #{reverse.0} parent=23 // loop_header
            %s38 = sphi 0, %s42
            %p39 = scmp.ge.s32.totalorder %s38, 1
            %s43 = sphi %s0, %s0
            %s44 = sphi %s2, %s2
          $region27: #{reverse.0} parent=23 // loop_header_branch
            %41 = sbr.rel (%p39) target = $region31
          $region28: #{reverse.0} parent=23 // loop_body
            %v45 = vld [vmem:[%s43] sm:$0xff]
            %46 = vst [vmem:[%s44] sm:$0xff] %v45
            %v47 = vld [vmem:[%s43 + $0x8] sm:$0xff]
            %48 = vst [vmem:[%s44 + $0x10] sm:$0xff] %v47
            %v49 = vld [vmem:[%s43 + $0x10] sm:$0xff]
            %50 = vst [vmem:[%s44 + $0x20] sm:$0xff] %v49
            %v51 = vld [vmem:[%s43 + $0x18] sm:$0xff]
            %52 = vst [vmem:[%s44 + $0x30] sm:$0xff] %v51
            %v53 = vld [vmem:[%s43 + $0x20] sm:$0xff]
            %54 = vst [vmem:[%s44 + $0x40] sm:$0xff] %v53
            %v55 = vld [vmem:[%s43 + $0x28] sm:$0xff]
            %56 = vst [vmem:[%s44 + $0x50] sm:$0xff] %v55
            %v57 = vld [vmem:[%s43 + $0x30] sm:$0xff]
            %58 = vst [vmem:[%s44 + $0x60] sm:$0xff] %v57
            %v59 = vld [vmem:[%s43 + $0x38] sm:$0xff]
            %60 = vst [vmem:[%s44 + $0x70] sm:$0xff] %v59
          $region29: #{reverse.0} parent=23 // loop_footer
            %s42 = sadd.s32 1, %s38
          $region30: #{reverse.0} parent=23 // loop_footer_branch
            %37 = sbr.rel target = $region26
          $region31: #{reverse.0} parent=23 // loop_exit
            _
        $region24: #{reverse.0} parent=8 // pred_fallthru
          _
        // Predicated region
        $region32: #{reverse.0} parent=8 // pred_check
          _
        $region33: #{reverse.0} parent=8 // pred_check_branch
          %62 = sbr.rel target = $region35
        $region34: #{reverse.0} parent=8 // pred_region
          _
        $region35: #{reverse.0} parent=8 // pred_fallthru
          _
      $region9: #{reverse.0} parent=4 // pred_fallthru
        _
      // Predicated region
      $region10: #{reverse.0} parent=4 // pred_check
        _
      $region11: #{reverse.0} parent=4 // pred_check_branch
        %8 = sbr.rel target = $region13
      $region12: #{reverse.0} parent=4 // pred_region
        %s10 = ssub.s32 256, 1
        loop: start=0, step=1, limit=1
        $region14: #{reverse.0} parent=12 // loop_pre_header
          _
        $region15: #{reverse.0} parent=12 // loop_header
          %s12 = sphi 0, %s16
          %p13 = scmp.ge.s32.totalorder %s12, 1
          %s17 = sphi %s0, %s0
          %s18 = sphi %s2, %s2
        $region16: #{reverse.0} parent=12 // loop_header_branch
          %15 = sbr.rel (%p13) target = $region20
        $region17: #{reverse.0} parent=12 // loop_body
          %v19 = vld [vmem:[%s17] sm:%s10]
          %20 = vst [vmem:[%s18] sm:%s10] %v19
          %v21 = vld [vmem:[%s17 + $0x8] sm:%s10]
          %22 = vst [vmem:[%s18 + $0x10] sm:%s10] %v21
          %v23 = vld [vmem:[%s17 + $0x10] sm:%s10]
          %24 = vst [vmem:[%s18 + $0x20] sm:%s10] %v23
          %v25 = vld [vmem:[%s17 + $0x18] sm:%s10]
          %26 = vst [vmem:[%s18 + $0x30] sm:%s10] %v25
          %v27 = vld [vmem:[%s17 + $0x20] sm:%s10]
          %28 = vst [vmem:[%s18 + $0x40] sm:%s10] %v27
          %v29 = vld [vmem:[%s17 + $0x28] sm:%s10]
          %30 = vst [vmem:[%s18 + $0x50] sm:%s10] %v29
          %v31 = vld [vmem:[%s17 + $0x30] sm:%s10]
          %32 = vst [vmem:[%s18 + $0x60] sm:%s10] %v31
          %v33 = vld [vmem:[%s17 + $0x38] sm:%s10]
          %34 = vst [vmem:[%s18 + $0x70] sm:%s10] %v33
        $region18: #{reverse.0} parent=12 // loop_footer
          %s16 = sadd.s32 1, %s12
        $region19: #{reverse.0} parent=12 // loop_footer_branch
          %11 = sbr.rel target = $region15
        $region20: #{reverse.0} parent=12 // loop_exit
          _
      $region13: #{reverse.0} parent=4 // pred_fallthru
        _
    $region5: #{reverse.0} parent=1 // pred_fallthru
      _
    %63 = vnop
    %s64 = scalar_lea.vmem [#allocation0], 7
    %v65 = vld [vmem:[%s64] ss:$-1 sm:$0xff]
    %v66 = vrot.slane %v65, 1
    %67 = vst [vmem:[#allocation1] sm:$0xff] %v66
    %s68 = scalar_lea.vmem [#allocation0], 8
    %s69 = scalar_lea.vmem %s68, 7 [#allocation0]
    %v70 = vld [vmem:[%s69] ss:$-1 sm:$0xff]
    %v71 = vrot.slane %v70, 1
    %v72 = vlaneseq
    %v73 = vshrl.u32 %v72, 7
    %vm74 = vcmp.lt.s32.totalorder %v73, 7
    %75 = vst.msk [vmem:[#allocation1] sm:$0xff] %vm74, %v71
    %s76 = scalar_lea.vmem [#allocation1], 8
    %s77 = scalar_lea.vmem [#allocation0], 16
    %s78 = scalar_lea.vmem %s77, 7 [#allocation0]
    %v79 = vld [vmem:[%s78] ss:$-1 sm:$0xff]
    %v80 = vrot.slane %v79, 1
    %81 = vst [vmem:[%s76] sm:$0xff] %v80
    %s82 = scalar_lea.vmem %s77, 8 [#allocation0]
    %s83 = scalar_lea.vmem %s82, 7 [#allocation0]
    %v84 = vld [vmem:[%s83] ss:$-1 sm:$0xff]
    %v85 = vrot.slane %v84, 1
    %v86 = vlaneseq
    %v87 = vshrl.u32 %v86, 7
    %vm88 = vcmp.lt.s32.totalorder %v87, 7
    %89 = vst.msk [vmem:[%s76] sm:$0xff] %vm88, %v85
    %s90 = scalar_lea.vmem [#allocation1], 16
    %s91 = scalar_lea.vmem [#allocation0], 32
    %s92 = scalar_lea.vmem %s91, 7 [#allocation0]
    %v93 = vld [vmem:[%s92] ss:$-1 sm:$0xff]
    %v94 = vrot.slane %v93, 1
    %95 = vst [vmem:[%s90] sm:$0xff] %v94
    %s96 = scalar_lea.vmem %s91, 8 [#allocation0]
    %s97 = scalar_lea.vmem %s96, 7 [#allocation0]
    %v98 = vld [vmem:[%s97] ss:$-1 sm:$0xff]
    %v99 = vrot.slane %v98, 1
    %v100 = vlaneseq
    %v101 = vshrl.u32 %v100, 7
    %vm102 = vcmp.lt.s32.totalorder %v101, 7
    %103 = vst.msk [vmem:[%s90] sm:$0xff] %vm102, %v99
    %s104 = scalar_lea.vmem [#allocation1], 24
    %s105 = scalar_lea.vmem [#allocation0], 48
    %s106 = scalar_lea.vmem %s105, 7 [#allocation0]
    %v107 = vld [vmem:[%s106] ss:$-1 sm:$0xff]
    %v108 = vrot.slane %v107, 1
    %109 = vst [vmem:[%s104] sm:$0xff] %v108
    %s110 = scalar_lea.vmem %s105, 8 [#allocation0]
    %s111 = scalar_lea.vmem %s110, 7 [#allocation0]
    %v112 = vld [vmem:[%s111] ss:$-1 sm:$0xff]
    %v113 = vrot.slane %v112, 1
    %v114 = vlaneseq
    %v115 = vshrl.u32 %v114, 7
    %vm116 = vcmp.lt.s32.totalorder %v115, 7
    %117 = vst.msk [vmem:[%s104] sm:$0xff] %vm116, %v113
    %s118 = scalar_lea.vmem [#allocation1], 32
    %s119 = scalar_lea.vmem [#allocation0], 64
    %s120 = scalar_lea.vmem %s119, 7 [#allocation0]
    %v121 = vld [vmem:[%s120] ss:$-1 sm:$0xff]
    %v122 = vrot.slane %v121, 1
    %123 = vst [vmem:[%s118] sm:$0xff] %v122
    %s124 = scalar_lea.vmem %s119, 8 [#allocation0]
    %s125 = scalar_lea.vmem %s124, 7 [#allocation0]
    %v126 = vld [vmem:[%s125] ss:$-1 sm:$0xff]
    %v127 = vrot.slane %v126, 1
    %v128 = vlaneseq
    %v129 = vshrl.u32 %v128, 7
    %vm130 = vcmp.lt.s32.totalorder %v129, 7
    %131 = vst.msk [vmem:[%s118] sm:$0xff] %vm130, %v127
    %s132 = scalar_lea.vmem [#allocation1], 40
    %s133 = scalar_lea.vmem [#allocation0], 80
    %s134 = scalar_lea.vmem %s133, 7 [#allocation0]
    %v135 = vld [vmem:[%s134] ss:$-1 sm:$0xff]
    %v136 = vrot.slane %v135, 1
    %137 = vst [vmem:[%s132] sm:$0xff] %v136
    %s138 = scalar_lea.vmem %s133, 8 [#allocation0]
    %s139 = scalar_lea.vmem %s138, 7 [#allocation0]
    %v140 = vld [vmem:[%s139] ss:$-1 sm:$0xff]
    %v141 = vrot.slane %v140, 1
    %v142 = vlaneseq
    %v143 = vshrl.u32 %v142, 7
    %vm144 = vcmp.lt.s32.totalorder %v143, 7
    %145 = vst.msk [vmem:[%s132] sm:$0xff] %vm144, %v141
    %s146 = scalar_lea.vmem [#allocation1], 48
    %s147 = scalar_lea.vmem [#allocation0], 96
    %s148 = scalar_lea.vmem %s147, 7 [#allocation0]
    %v149 = vld [vmem:[%s148] ss:$-1 sm:$0xff]
    %v150 = vrot.slane %v149, 1
    %151 = vst [vmem:[%s146] sm:$0xff] %v150
    %s152 = scalar_lea.vmem %s147, 8 [#allocation0]
    %s153 = scalar_lea.vmem %s152, 7 [#allocation0]
    %v154 = vld [vmem:[%s153] ss:$-1 sm:$0xff]
    %v155 = vrot.slane %v154, 1
    %v156 = vlaneseq
    %v157 = vshrl.u32 %v156, 7
    %vm158 = vcmp.lt.s32.totalorder %v157, 7
    %159 = vst.msk [vmem:[%s146] sm:$0xff] %vm158, %v155
    %s160 = scalar_lea.vmem [#allocation1], 56
    %s161 = scalar_lea.vmem [#allocation0], 112
    %s162 = scalar_lea.vmem %s161, 7 [#allocation0]
    %v163 = vld [vmem:[%s162] ss:$-1 sm:$0xff]
    %v164 = vrot.slane %v163, 1
    %165 = vst [vmem:[%s160] sm:$0xff] %v164
    %s166 = scalar_lea.vmem %s161, 8 [#allocation0]
    %s167 = scalar_lea.vmem %s166, 7 [#allocation0]
    %v168 = vld [vmem:[%s167] ss:$-1 sm:$0xff]
    %v169 = vrot.slane %v168, 1
    %v170 = vlaneseq
    %v171 = vshrl.u32 %v170, 7
    %vm172 = vcmp.lt.s32.totalorder %v171, 7
    %173 = vst.msk [vmem:[%s160] sm:$0xff] %vm172, %v169
    // Predicated region
    $region36: #{reverse.0} parent=1 // pred_check
      _
    $region37: #{reverse.0} parent=1 // pred_check_branch
      %175 = sbr.rel (0) target = $region39
    $region38: #{reverse.0} parent=1 // pred_region
      // Predicated region
      $region40: #{reverse.0} parent=38 // pred_check
        _
      $region41: #{reverse.0} parent=38 // pred_check_branch
        %177 = sbr.rel (0) target = $region43
      $region42: #{reverse.0} parent=38 // pred_region
        // Predicated region
        $region55: #{reverse.0} parent=42 // pred_check
          _
        $region56: #{reverse.0} parent=42 // pred_check_branch
          %207 = sbr.rel (0) target = $region58
        $region57: #{reverse.0} parent=42 // pred_region
          loop: start=0, step=1, limit=1
          $region59: #{reverse.0} parent=57 // loop_pre_header
            _
          $region60: #{reverse.0} parent=57 // loop_header
            %s209 = sphi 0, %s213
            %p210 = scmp.ge.s32.totalorder %s209, 1
            %s214 = sphi [#allocation1], [#allocation1]
            %s215 = sphi %s1, %s1
          $region61: #{reverse.0} parent=57 // loop_header_branch
            %212 = sbr.rel (%p210) target = $region65
          $region62: #{reverse.0} parent=57 // loop_body
            %v216 = vld [vmem:[%s214] sm:$0xff]
            %217 = vst [vmem:[%s215] sm:$0xff] %v216
            %v218 = vld [vmem:[%s214 + $0x8] sm:$0xff]
            %219 = vst [vmem:[%s215 + $0x8] sm:$0xff] %v218
            %v220 = vld [vmem:[%s214 + $0x10] sm:$0xff]
            %221 = vst [vmem:[%s215 + $0x10] sm:$0xff] %v220
            %v222 = vld [vmem:[%s214 + $0x18] sm:$0xff]
            %223 = vst [vmem:[%s215 + $0x18] sm:$0xff] %v222
            %v224 = vld [vmem:[%s214 + $0x20] sm:$0xff]
            %225 = vst [vmem:[%s215 + $0x20] sm:$0xff] %v224
            %v226 = vld [vmem:[%s214 + $0x28] sm:$0xff]
            %227 = vst [vmem:[%s215 + $0x28] sm:$0xff] %v226
            %v228 = vld [vmem:[%s214 + $0x30] sm:$0xff]
            %229 = vst [vmem:[%s215 + $0x30] sm:$0xff] %v228
            %v230 = vld [vmem:[%s214 + $0x38] sm:$0xff]
            %231 = vst [vmem:[%s215 + $0x38] sm:$0xff] %v230
          $region63: #{reverse.0} parent=57 // loop_footer
            %s213 = sadd.s32 1, %s209
          $region64: #{reverse.0} parent=57 // loop_footer_branch
            %208 = sbr.rel target = $region60
          $region65: #{reverse.0} parent=57 // loop_exit
            _
        $region58: #{reverse.0} parent=42 // pred_fallthru
          _
        // Predicated region
        $region66: #{reverse.0} parent=42 // pred_check
          _
        $region67: #{reverse.0} parent=42 // pred_check_branch
          %233 = sbr.rel target = $region69
        $region68: #{reverse.0} parent=42 // pred_region
          _
        $region69: #{reverse.0} parent=42 // pred_fallthru
          _
      $region43: #{reverse.0} parent=38 // pred_fallthru
        _
      // Predicated region
      $region44: #{reverse.0} parent=38 // pred_check
        _
      $region45: #{reverse.0} parent=38 // pred_check_branch
        %179 = sbr.rel target = $region47
      $region46: #{reverse.0} parent=38 // pred_region
        %s181 = ssub.s32 256, 1
        loop: start=0, step=1, limit=1
        $region48: #{reverse.0} parent=46 // loop_pre_header
          _
        $region49: #{reverse.0} parent=46 // loop_header
          %s183 = sphi 0, %s187
          %p184 = scmp.ge.s32.totalorder %s183, 1
          %s188 = sphi [#allocation1], [#allocation1]
          %s189 = sphi %s1, %s1
        $region50: #{reverse.0} parent=46 // loop_header_branch
          %186 = sbr.rel (%p184) target = $region54
        $region51: #{reverse.0} parent=46 // loop_body
          %v190 = vld [vmem:[%s188] sm:%s181]
          %191 = vst [vmem:[%s189] sm:%s181] %v190
          %v192 = vld [vmem:[%s188 + $0x8] sm:%s181]
          %193 = vst [vmem:[%s189 + $0x8] sm:%s181] %v192
          %v194 = vld [vmem:[%s188 + $0x10] sm:%s181]
          %195 = vst [vmem:[%s189 + $0x10] sm:%s181] %v194
          %v196 = vld [vmem:[%s188 + $0x18] sm:%s181]
          %197 = vst [vmem:[%s189 + $0x18] sm:%s181] %v196
          %v198 = vld [vmem:[%s188 + $0x20] sm:%s181]
          %199 = vst [vmem:[%s189 + $0x20] sm:%s181] %v198
          %v200 = vld [vmem:[%s188 + $0x28] sm:%s181]
          %201 = vst [vmem:[%s189 + $0x28] sm:%s181] %v200
          %v202 = vld [vmem:[%s188 + $0x30] sm:%s181]
          %203 = vst [vmem:[%s189 + $0x30] sm:%s181] %v202
          %v204 = vld [vmem:[%s188 + $0x38] sm:%s181]
          %205 = vst [vmem:[%s189 + $0x38] sm:%s181] %v204
        $region52: #{reverse.0} parent=46 // loop_footer
          %s187 = sadd.s32 1, %s183
        $region53: #{reverse.0} parent=46 // loop_footer_branch
          %182 = sbr.rel target = $region49
        $region54: #{reverse.0} parent=46 // loop_exit
          _
      $region47: #{reverse.0} parent=38 // pred_fallthru
        _
    $region39: #{reverse.0} parent=1 // pred_fallthru
      _
    %234 = vnop

// kernel: fourier_unit_forward.1
$region0: #{fourier_unit_forward.1}
  #allocation0 [shape = 'u32[]', space=smem, size = 0x4, offset = 0x4, fixed_abs, tag = 'smem constant byte address 0x4 - core index']
  #allocation1 [shape = 'u32[72,128]{1,0:T(1,128)}', space=vmem, size = 0x9000, scoped, tag = 'internal scratch']
  %s0 = inlined_call_operand.vmem [shape: bf16[2,8,144], index: 0, kind: input, shape index: {}]
  %s1 = inlined_call_operand.vmem [shape: bf16[8,8], index: 1, kind: input, shape index: {}]
  %s2 = inlined_call_operand.vmem [shape: f32[8,1], index: 2, kind: input, shape index: {}]
  %s3 = inlined_call_operand.vmem [shape: bf16[2,8,144], index: 3, kind: output, shape index: {}]
  %s4 = sld [smem:[#allocation0]]
  $region22: #{fourier_unit_forward.1} parent=0
    _
  %s6 = ssub.s32 1, %s4
  %s7 = scalar_select 0, %s6, %s4
  // Predicated region
  $region2: #{fourier_unit_forward.1} parent=0 // pred_check
    _
  $region3: #{fourier_unit_forward.1} parent=0 // pred_check_branch
    %9 = sbr.rel (0) target = $region5
  $region4: #{fourier_unit_forward.1} parent=0 // pred_region
    _
  $region5: #{fourier_unit_forward.1} parent=0 // pred_fallthru
    _
  // Predicated region
  $region6: #{fourier_unit_forward.1} parent=0 // pred_check
    _
  $region7: #{fourier_unit_forward.1} parent=0 // pred_check_branch
    %11 = sbr.rel (0) target = $region9
  $region8: #{fourier_unit_forward.1} parent=0 // pred_region
    _
  $region9: #{fourier_unit_forward.1} parent=0 // pred_fallthru
    _
  // Predicated region
  $region10: #{fourier_unit_forward.1} parent=0 // pred_check
    _
  $region11: #{fourier_unit_forward.1} parent=0 // pred_check_branch
    %13 = sbr.rel (0) target = $region13
  $region12: #{fourier_unit_forward.1} parent=0 // pred_region
    _
  $region13: #{fourier_unit_forward.1} parent=0 // pred_fallthru
    _
  %v15 = vld [vmem:[%s1] sm:$0xf]
  %v16 = vld [vmem:[%s2] sm:$0xff]
  %v17 = vld [vmem:[%s0] sm:$0xff]
  %19 = vset.pattern.permute.xlu0 0
  %20 = vperm.xlu0 %19, %v16
  %v21 = vpop.permute.xlu0 %20
  %v24 = vunpack.c.l.b16 %v17
  %v25 = vunpack.c.h.b16 %v17
  %v26 = vpack.c.b16 %v24, %v24
  %v27 = vpack.c.b16 %v25, %v25
  %vm28 = vcmask 64512
  %v30 = vsel %vm28, %v15, 0
  %vm32 = vcmask 1043456
  %v34 = vsel %vm32, %v26, 0
  %v37 = vsel %vm32, %v27, 0
  %39 = vmatpush.bf16.msra.mxu0 0
  %40 = vmatpush.bf16.msra.mxu0 0
  %41 = vmatpush.bf16.msra.mxu0 0
  %42 = vmatpush.bf16.msra.mxu0 0
  %43 = vmatpush.bf16.msra.mxu0 0
  %44 = vmatpush.bf16.msra.mxu0 0
  %45 = vmatpush.bf16.msra.mxu0 0
  %46 = vmatpush.bf16.msra.mxu0 %v34
  %47 = vmatmul.bf16.gmra.mxu0 %v30
  %v48 = vpop.f32.mrf.mxu0
  %v49 = vadd.f32 %v21, %v48
  %v50 = vpop.f32.mrf.mxu0
  %51 = vdwg.mxu0
  %52 = vmatpush.bf16.msra.mxu0 0
  %53 = vmatpush.bf16.msra.mxu0 0
  %54 = vmatpush.bf16.msra.mxu0 0
  %55 = vmatpush.bf16.msra.mxu0 0
  %56 = vmatpush.bf16.msra.mxu0 0
  %57 = vmatpush.bf16.msra.mxu0 0
  %58 = vmatpush.bf16.msra.mxu0 0
  %59 = vmatpush.bf16.msra.mxu0 %v37
  %60 = vmatmul.bf16.gmra.mxu0 %v30
  %v61 = vpop.f32.mrf.mxu0
  %v62 = vadd.f32 %v21, %v61
  %v63 = vpop.f32.mrf.mxu0
  %64 = vdwg.mxu0
  %v65 = vmax.f32 %v49, 0.0
  %v66 = vmax.f32 %v62, 0.0
  %v67 = vpack.c.bf16 %v66, %v65
  %vm68 = vcmask 130052
  %vm69 = vmor %vm68, %vm32
  %70 = vst.msk [vmem:[%s3] sm:$0xff] %vm69, %v67
  %s71 = scalar_lea.vmem %s0, 8
  %v72 = vld [vmem:[%s71] sm:$0xff]
  %v74 = vunpack.c.l.b16 %v72
  %v75 = vunpack.c.h.b16 %v72
  %v76 = vpack.c.b16 %v74, %v74
  %v77 = vpack.c.b16 %v75, %v75
  %v79 = vsel %vm32, %v76, 0
  %v82 = vsel %vm32, %v77, 0
  %84 = vmatpush.bf16.msra.mxu0 0
  %85 = vmatpush.bf16.msra.mxu0 0
  %86 = vmatpush.bf16.msra.mxu0 0
  %87 = vmatpush.bf16.msra.mxu0 0
  %88 = vmatpush.bf16.msra.mxu0 0
  %89 = vmatpush.bf16.msra.mxu0 0
  %90 = vmatpush.bf16.msra.mxu0 0
  %91 = vmatpush.bf16.msra.mxu0 %v79
  %92 = vmatmul.bf16.gmra.mxu0 %v30
  %v93 = vpop.f32.mrf.mxu0
  %v94 = vadd.f32 %v21, %v93
  %v95 = vpop.f32.mrf.mxu0
  %96 = vdwg.mxu0
  %97 = vmatpush.bf16.msra.mxu0 0
  %98 = vmatpush.bf16.msra.mxu0 0
  %99 = vmatpush.bf16.msra.mxu0 0
  %100 = vmatpush.bf16.msra.mxu0 0
  %101 = vmatpush.bf16.msra.mxu0 0
  %102 = vmatpush.bf16.msra.mxu0 0
  %103 = vmatpush.bf16.msra.mxu0 0
  %104 = vmatpush.bf16.msra.mxu0 %v82
  %105 = vmatmul.bf16.gmra.mxu0 %v30
  %v106 = vpop.f32.mrf.mxu0
  %v107 = vadd.f32 %v21, %v106
  %v108 = vpop.f32.mrf.mxu0
  %109 = vdwg.mxu0
  %v110 = vmax.f32 %v94, 0.0
  %v111 = vmax.f32 %v107, 0.0
  %v112 = vpack.c.bf16 %v111, %v110
  %s113 = scalar_lea.vmem %s3, 8
  %114 = vst.msk [vmem:[%s113] sm:$0xff] %vm69, %v112
  // Predicated region
  $region14: #{fourier_unit_forward.1} parent=0 // pred_check
    _
  $region15: #{fourier_unit_forward.1} parent=0 // pred_check_branch
    %116 = sbr.rel (0) target = $region17
  $region16: #{fourier_unit_forward.1} parent=0 // pred_region
    _
  $region17: #{fourier_unit_forward.1} parent=0 // pred_fallthru
    _
  // Predicated region
  $region18: #{fourier_unit_forward.1} parent=0 // pred_check
    _
  $region19: #{fourier_unit_forward.1} parent=0 // pred_check_branch
    %118 = sbr.rel (0) target = $region21
  $region20: #{fourier_unit_forward.1} parent=0 // pred_region
    _
  $region21: #{fourier_unit_forward.1} parent=0 // pred_fallthru
    _

</llo_original>
